<compile_context>
chip_gen: v5e
topology: v5e:2x2
jax: 0.10.0
libtpu: 0.0.40
codegen_flags: <defaults>
</compile_context>

<pallas_src>
import jax
import jax.numpy as jnp
from jax.experimental import pallas as pl
from jax.experimental.pallas import tpu as pltpu


def _round_up(a, b):
    return ((a + b - 1) // b) * b


def _gen_loc_kernel(x_ref, ww_ref, bw_ref, wh_ref, bh_ref, ow_ref, oh_ref):
    # x_ref : (tm, K)   row tile of flattened input
    # ww_ref: (K, Nw)   conv_w weight (pre-transposed), bw_ref: (1, Nw)
    # wh_ref: (K, Nh)   conv_h weight (pre-transposed), bh_ref: (1, Nh)
    # ow_ref: (tm, Nw)  exact-width conv_w output
    # oh_ref: (tm, Nh)  exact-width conv_h output
    x = x_ref[...]
    acc_w = jnp.dot(x, ww_ref[...], preferred_element_type=jnp.float32)
    ow_ref[...] = jnp.maximum(acc_w + bw_ref[...], 0.0).astype(ow_ref.dtype)
    acc_h = jnp.dot(x, wh_ref[...], preferred_element_type=jnp.float32)
    oh_ref[...] = jnp.maximum(acc_h + bh_ref[...], 0.0).astype(oh_ref.dtype)


def prepare_generate_location_params(wh, bh, ww, bw, dtype=jnp.float32):
    """One-time parameter preprocessing (hoisted out of the per-call path).

    wh: (Nh, K), bh: (Nh,), ww: (Nw, K), bw: (Nw,)  [PyTorch Conv1d layout].
    Returns (ww_t, bw2, wh_t, bh2) ready for `generate_location_forward`."""
    ww_t = jnp.asarray(ww, dtype).T                 # (K, Nw)
    wh_t = jnp.asarray(wh, dtype).T                 # (K, Nh)
    bw2 = jnp.asarray(bw, jnp.float32)[None, :]     # (1, Nw)
    bh2 = jnp.asarray(bh, jnp.float32)[None, :]     # (1, Nh)
    return ww_t, bw2, wh_t, bh2


def _choose_tm(M, max_tm):
    if M <= 256:
        return M  # single grid step; block dim == full array dim (no 8-divisibility needed)
    # Guarantee >= 2 row-tile steps so v7x's two TensorCores both get work;
    # tm is a multiple of 8, the last tile may overhang (Pallas masks it).
    return min(max_tm, _round_up((M + 1) // 2, 8))


def generate_location_forward(x, ww_t, bw, wh_t, bh, *, max_tm=4096):
    """x: (B, C, H, W); (ww_t, bw, wh_t, bh) from prepare_generate_location_params.
    Returns (out_w, out_h) with shapes (B, C, Nw), (B, C, Nh) — same order as
    the PyTorch module's (x, y) return."""
    B, C, H, W = x.shape
    K = H * W
    Nw = ww_t.shape[1]
    Nh = wh_t.shape[1]
    M = B * C

    x2d = x.reshape(M, K)              # contiguous reshape, no copy
    tm = _choose_tm(M, max_tm)
    grid = (pl.cdiv(M, tm),)           # last tile may overhang; Pallas masks it

    out_w, out_h = pl.pallas_call(
        _gen_loc_kernel,
        out_shape=(
            jax.ShapeDtypeStruct((M, Nw), x.dtype),
            jax.ShapeDtypeStruct((M, Nh), x.dtype),
        ),
        grid_spec=pltpu.PrefetchScalarGridSpec(
            num_scalar_prefetch=0,
            grid=grid,
            in_specs=[
                pl.BlockSpec((tm, K), lambda i: (i, 0)),
                pl.BlockSpec((K, Nw), lambda i: (0, 0)),
                pl.BlockSpec((1, Nw), lambda i: (0, 0)),
                pl.BlockSpec((K, Nh), lambda i: (0, 0)),
                pl.BlockSpec((1, Nh), lambda i: (0, 0)),
            ],
            out_specs=[
                pl.BlockSpec((tm, Nw), lambda i: (i, 0)),
                pl.BlockSpec((tm, Nh), lambda i: (i, 0)),
            ],
        ),
        compiler_params=pltpu.CompilerParams(
            dimension_semantics=("parallel",),
            vmem_limit_bytes=48 * 1024 * 1024,
        ),
    )(x2d, ww_t, bw, wh_t, bh)

    return out_w.reshape(B, C, Nw), out_h.reshape(B, C, Nh)


if __name__ == "__main__":
    # Module config: intermediate_size = (4, 4) -> in_channels = 16 = H*W,
    # image_size = (16, 8) -> conv_w out = 16, conv_h out = 8,
    # embedding_channels = 32 (the conv1d "length" dim = C of input x).
    B, C, H, W = 2, 32, 4, 4
    image_size = (16, 8)
    K = H * W
    Nh, Nw = image_size[1], image_size[0]

    key = jax.random.PRNGKey(0)
    k1, k2, k3, k4, k5 = jax.random.split(key, 5)
    x = jax.random.normal(k1, (B, C, H, W), jnp.float32)

    # Deterministic parameter init (PyTorch Conv1d default: U(-1/sqrt(K), 1/sqrt(K))).
    bound = 1.0 / (K ** 0.5)
    wh = jax.random.uniform(k2, (Nh, K), jnp.float32, -bound, bound)
    bh = jax.random.uniform(k3, (Nh,), jnp.float32, -bound, bound)
    ww = jax.random.uniform(k4, (Nw, K), jnp.float32, -bound, bound)
    bw = jax.random.uniform(k5, (Nw,), jnp.float32, -bound, bound)

    # One-time prep (hoisted out of the per-forward path).
    ww_t, bw2, wh_t, bh2 = jax.block_until_ready(
        prepare_generate_location_params(wh, bh, ww, bw))

    out_x, out_y = jax.block_until_ready(
        generate_location_forward(x, ww_t, bw2, wh_t, bh2))

    # Pure-JAX reference (same math as the PyTorch forward).
    x2d = x.reshape(B, C, K)
    ref_y = jnp.maximum(jnp.einsum('bck,nk->bcn', x2d, wh) + bh, 0.0)  # conv_h
    ref_x = jnp.maximum(jnp.einsum('bck,nk->bcn', x2d, ww) + bw, 0.0)  # conv_w

    assert out_x.shape == (B, C, Nw) and out_y.shape == (B, C, Nh)
    assert jnp.allclose(out_x, ref_x, atol=1e-5, rtol=1e-5)
    assert jnp.allclose(out_y, ref_y, atol=1e-5, rtol=1e-5)
    print("KERNEL_OK")
</pallas_src>

<mosaic_0001>
module attributes {stable_mosaic.version = 11 : i64} {
  func.func @_gen_loc_kernel(%arg0: i32, %arg1: memref<64x16xf32, #tpu.memory_space<vmem>>, %arg2: memref<16x16xf32, #tpu.memory_space<vmem>>, %arg3: memref<1x16xf32, #tpu.memory_space<vmem>>, %arg4: memref<16x8xf32, #tpu.memory_space<vmem>>, %arg5: memref<1x8xf32, #tpu.memory_space<vmem>>, %arg6: memref<64x16xf32, #tpu.memory_space<vmem>>, %arg7: memref<64x8xf32, #tpu.memory_space<vmem>>) attributes {dimension_semantics = [#tpu.dimension_semantics<parallel>], iteration_bounds = array<i64: 1>, scalar_prefetch = 0 : i64, scratch_operands = 0 : i64, tpu.core_type = #tpu.core_type<tc>, window_params = [{transform_indices = @transform_0, window_bounds = array<i64: 64, 16>}, {pipeline_mode = #tpu.pipeline_mode<synchronous>, transform_indices = @transform_1, window_bounds = array<i64: 16, 16>}, {pipeline_mode = #tpu.pipeline_mode<synchronous>, transform_indices = @transform_2, window_bounds = array<i64: 1, 16>}, {pipeline_mode = #tpu.pipeline_mode<synchronous>, transform_indices = @transform_3, window_bounds = array<i64: 16, 8>}, {pipeline_mode = #tpu.pipeline_mode<synchronous>, transform_indices = @transform_4, window_bounds = array<i64: 1, 8>}, {transform_indices = @transform_5, window_bounds = array<i64: 64, 16>}, {transform_indices = @transform_6, window_bounds = array<i64: 64, 8>}]} {
    %c0 = arith.constant 0 : index
    %c0_0 = arith.constant 0 : index
    %0 = vector.load %arg1[%c0, %c0_0] : memref<64x16xf32, #tpu.memory_space<vmem>>, vector<64x16xf32>
    %c0_1 = arith.constant 0 : index
    %c0_2 = arith.constant 0 : index
    %1 = vector.load %arg2[%c0_1, %c0_2] : memref<16x16xf32, #tpu.memory_space<vmem>>, vector<16x16xf32>
    %cst = arith.constant dense<0.000000e+00> : vector<64x16xf32>
    %2 = tpu.matmul %0, %1, %cst {dimension_numbers = #tpu.dot_dimension_numbers<[1], [0], [0], [1], [0, 0, 1, 1], [], []>} : vector<64x16xf32>, vector<16x16xf32>, vector<64x16xf32> -> vector<64x16xf32>
    %c0_3 = arith.constant 0 : index
    %c0_4 = arith.constant 0 : index
    %3 = vector.load %arg3[%c0_3, %c0_4] : memref<1x16xf32, #tpu.memory_space<vmem>>, vector<1x16xf32>
    %4 = vector.broadcast %3 : vector<1x16xf32> to vector<64x16xf32>
    %5 = arith.addf %2, %4 : vector<64x16xf32>
    %cst_5 = arith.constant 0.000000e+00 : f32
    %6 = vector.broadcast %cst_5 : f32 to vector<64x16xf32>
    %7 = arith.maximumf %5, %6 : vector<64x16xf32>
    %c0_6 = arith.constant 0 : index
    %c0_7 = arith.constant 0 : index
    %8 = vector.load %arg6[%c0_6, %c0_7] : memref<64x16xf32, #tpu.memory_space<vmem>>, vector<64x16xf32>
    tpu.vector_store %arg6[%c0_6, %c0_7], %7 {strides = array<i32>} : memref<64x16xf32, #tpu.memory_space<vmem>>, vector<64x16xf32>,
    %c0_8 = arith.constant 0 : index
    %c0_9 = arith.constant 0 : index
    %9 = vector.load %arg4[%c0_8, %c0_9] : memref<16x8xf32, #tpu.memory_space<vmem>>, vector<16x8xf32>
    %cst_10 = arith.constant dense<0.000000e+00> : vector<64x8xf32>
    %10 = tpu.matmul %0, %9, %cst_10 {dimension_numbers = #tpu.dot_dimension_numbers<[1], [0], [0], [1], [0, 0, 1, 1], [], []>} : vector<64x16xf32>, vector<16x8xf32>, vector<64x8xf32> -> vector<64x8xf32>
    %c0_11 = arith.constant 0 : index
    %c0_12 = arith.constant 0 : index
    %11 = vector.load %arg5[%c0_11, %c0_12] : memref<1x8xf32, #tpu.memory_space<vmem>>, vector<1x8xf32>
    %12 = vector.broadcast %11 : vector<1x8xf32> to vector<64x8xf32>
    %13 = arith.addf %10, %12 : vector<64x8xf32>
    %cst_13 = arith.constant 0.000000e+00 : f32
    %14 = vector.broadcast %cst_13 : f32 to vector<64x8xf32>
    %15 = arith.maximumf %13, %14 : vector<64x8xf32>
    %c0_14 = arith.constant 0 : index
    %c0_15 = arith.constant 0 : index
    %16 = vector.load %arg7[%c0_14, %c0_15] : memref<64x8xf32, #tpu.memory_space<vmem>>, vector<64x8xf32>
    tpu.vector_store %arg7[%c0_14, %c0_15], %15 {strides = array<i32>} : memref<64x8xf32, #tpu.memory_space<vmem>>, vector<64x8xf32>,
    return
  }
  func.func @transform_0(%arg0: i32) -> (i32, i32) {
    %c0_i32 = arith.constant 0 : i32
    %c0_i32_0 = arith.constant 0 : i32
    return %arg0, %c0_i32 : i32, i32
  }
  func.func @transform_1(%arg0: i32) -> (i32, i32) {
    %c0_i32 = arith.constant 0 : i32
    %c0_i32_0 = arith.constant 0 : i32
    %c0_i32_1 = arith.constant 0 : i32
    return %c0_i32, %c0_i32_0 : i32, i32
  }
  func.func @transform_2(%arg0: i32) -> (i32, i32) {
    %c0_i32 = arith.constant 0 : i32
    %c0_i32_0 = arith.constant 0 : i32
    %c0_i32_1 = arith.constant 0 : i32
    return %c0_i32, %c0_i32_0 : i32, i32
  }
  func.func @transform_3(%arg0: i32) -> (i32, i32) {
    %c0_i32 = arith.constant 0 : i32
    %c0_i32_0 = arith.constant 0 : i32
    %c0_i32_1 = arith.constant 0 : i32
    return %c0_i32, %c0_i32_0 : i32, i32
  }
  func.func @transform_4(%arg0: i32) -> (i32, i32) {
    %c0_i32 = arith.constant 0 : i32
    %c0_i32_0 = arith.constant 0 : i32
    %c0_i32_1 = arith.constant 0 : i32
    return %c0_i32, %c0_i32_0 : i32, i32
  }
  func.func @transform_5(%arg0: i32) -> (i32, i32) {
    %c0_i32 = arith.constant 0 : i32
    %c0_i32_0 = arith.constant 0 : i32
    return %arg0, %c0_i32 : i32, i32
  }
  func.func @transform_6(%arg0: i32) -> (i32, i32) {
    %c0_i32 = arith.constant 0 : i32
    %c0_i32_0 = arith.constant 0 : i32
    return %arg0, %c0_i32 : i32, i32
  }
}

</mosaic_0001>

<llo_original>
// kernel: tpu_custom_call.1
$region0: #{tpu_custom_call.1}
  #allocation0 [shape = 'u32[]', space=smem, size = 0x4, offset = 0x4, fixed_abs, tag = 'smem constant byte address 0x4 - core index']
  #allocation1 [shape = 'u32[72,128]{1,0:T(1,128)}', space=vmem, size = 0x9000, scoped, tag = 'internal scratch']
  %s0 = inlined_call_operand.vmem [shape: f32[64,16], index: 0, kind: input, shape index: {}]
  %s1 = inlined_call_operand.vmem [shape: f32[16,16], index: 1, kind: input, shape index: {}]
  %s2 = inlined_call_operand.vmem [shape: f32[1,16], index: 2, kind: input, shape index: {}]
  %s3 = inlined_call_operand.vmem [shape: f32[16,8], index: 3, kind: input, shape index: {}]
  %s4 = inlined_call_operand.vmem [shape: f32[1,8], index: 4, kind: input, shape index: {}]
  %s5 = inlined_call_operand.vmem [shape: f32[64,16], index: 5, kind: output, shape index: {0}]
  %s6 = inlined_call_operand.vmem [shape: f32[64,8], index: 6, kind: output, shape index: {1}]
  %7 = xla_tuple %s5, %s6
  %s8 = sld [smem:[#allocation0]]
  $region38: #{tpu_custom_call.1} parent=0
    _
  %s10 = ssub.s32 1, %s8
  %s11 = scalar_select 0, %s10, %s8
  // Predicated region
  $region2: #{tpu_custom_call.1} parent=0 // pred_check
    _
  $region3: #{tpu_custom_call.1} parent=0 // pred_check_branch
    %13 = sbr.rel (0) target = $region5
  $region4: #{tpu_custom_call.1} parent=0 // pred_region
    _
  $region5: #{tpu_custom_call.1} parent=0 // pred_fallthru
    _
  // Predicated region
  $region6: #{tpu_custom_call.1} parent=0 // pred_check
    _
  $region7: #{tpu_custom_call.1} parent=0 // pred_check_branch
    %15 = sbr.rel (0) target = $region9
  $region8: #{tpu_custom_call.1} parent=0 // pred_region
    _
  $region9: #{tpu_custom_call.1} parent=0 // pred_fallthru
    _
  // Predicated region
  $region10: #{tpu_custom_call.1} parent=0 // pred_check
    _
  $region11: #{tpu_custom_call.1} parent=0 // pred_check_branch
    %17 = sbr.rel (0) target = $region13
  $region12: #{tpu_custom_call.1} parent=0 // pred_region
    _
  $region13: #{tpu_custom_call.1} parent=0 // pred_fallthru
    _
  // Predicated region
  $region14: #{tpu_custom_call.1} parent=0 // pred_check
    _
  $region15: #{tpu_custom_call.1} parent=0 // pred_check_branch
    %19 = sbr.rel (0) target = $region17
  $region16: #{tpu_custom_call.1} parent=0 // pred_region
    _
  $region17: #{tpu_custom_call.1} parent=0 // pred_fallthru
    _
  // Predicated region
  $region18: #{tpu_custom_call.1} parent=0 // pred_check
    _
  $region19: #{tpu_custom_call.1} parent=0 // pred_check_branch
    %21 = sbr.rel (0) target = $region21
  $region20: #{tpu_custom_call.1} parent=0 // pred_region
    _
  $region21: #{tpu_custom_call.1} parent=0 // pred_fallthru
    _
  %v22 = vld [vmem:[%s0] sm:$0xff]
  %v23 = vld [vmem:[%s0 + $0x8] sm:$0xff]
  %v24 = vld [vmem:[%s0 + $0x10] sm:$0xff]
  %v25 = vld [vmem:[%s0 + $0x18] sm:$0xff]
  %v26 = vld [vmem:[%s0 + $0x20] sm:$0xff]
  %v27 = vld [vmem:[%s0 + $0x28] sm:$0xff]
  %v28 = vld [vmem:[%s0 + $0x30] sm:$0xff]
  %v29 = vld [vmem:[%s0 + $0x38] sm:$0xff]
  %v30 = vld [vmem:[%s1] sm:$0xff]
  %v31 = vld [vmem:[%s1 + $0x8] sm:$0xff]
  %v32 = vld [vmem:[%s2] sm:$0x1]
  %v34 = vperm.slane %v32, 0
  %vm36 = vcmask 130048
  %v38 = vsel %vm36, %v22, 0
  %v41 = vsel %vm36, %v23, 0
  %v44 = vsel %vm36, %v24, 0
  %v47 = vsel %vm36, %v25, 0
  %v50 = vsel %vm36, %v26, 0
  %v53 = vsel %vm36, %v27, 0
  %v56 = vsel %vm36, %v28, 0
  %v59 = vsel %vm36, %v29, 0
  %61 = vmatpush.msra.mxu0 0.0
  %62 = vmatpush.msra.mxu0 0.0
  %63 = vmatpush.msra.mxu0 0.0
  %64 = vmatpush.msra.mxu0 0.0
  %65 = vmatpush.msra.mxu0 0.0
  %66 = vmatpush.msra.mxu0 0.0
  %67 = vmatpush.msra.mxu0 0.0
  %68 = vmatpush.msra.mxu0 0.0
  %69 = vmatpush.msra.mxu0 0.0
  %70 = vmatpush.msra.mxu0 0.0
  %71 = vmatpush.msra.mxu0 0.0
  %72 = vmatpush.msra.mxu0 0.0
  %73 = vmatpush.msra.mxu0 0.0
  %74 = vmatpush.msra.mxu0 0.0
  %75 = vmatpush.msra.mxu0 %v31
  %76 = vmatpush.msra.mxu0 %v30
  %77 = vmatmul.f32.gmra.mxu0 %v38
  %v78 = vpop.f32.mrf.mxu0
  %v79 = vadd.f32 %v34, %v78
  %80 = vmatmul.f32.gmra.mxu0 %v41
  %v81 = vpop.f32.mrf.mxu0
  %v82 = vadd.f32 %v34, %v81
  %83 = vmatmul.f32.gmra.mxu0 %v44
  %v84 = vpop.f32.mrf.mxu0
  %v85 = vadd.f32 %v34, %v84
  %86 = vmatmul.f32.gmra.mxu0 %v47
  %v87 = vpop.f32.mrf.mxu0
  %v88 = vadd.f32 %v34, %v87
  %89 = vmatmul.f32.gmra.mxu0 %v50
  %v90 = vpop.f32.mrf.mxu0
  %v91 = vadd.f32 %v34, %v90
  %92 = vmatmul.f32.gmra.mxu0 %v53
  %v93 = vpop.f32.mrf.mxu0
  %v94 = vadd.f32 %v34, %v93
  %95 = vmatmul.f32.gmra.mxu0 %v56
  %v96 = vpop.f32.mrf.mxu0
  %v97 = vadd.f32 %v34, %v96
  %98 = vmatmul.f32.gmra.mxu0 %v59
  %v99 = vpop.f32.mrf.mxu0
  %v100 = vadd.f32 %v34, %v99
  %101 = vdwg.mxu0
  %v102 = vmax.f32 %v79, 0.0
  %v103 = vmax.f32 %v82, 0.0
  %v104 = vmax.f32 %v85, 0.0
  %v105 = vmax.f32 %v88, 0.0
  %v106 = vmax.f32 %v91, 0.0
  %v107 = vmax.f32 %v94, 0.0
  %v108 = vmax.f32 %v97, 0.0
  %v109 = vmax.f32 %v100, 0.0
  %110 = vst.msk [vmem:[%s5] sm:$0xff] %vm36, %v102
  %111 = vst.msk [vmem:[%s5 + $0x8] sm:$0xff] %vm36, %v103
  %112 = vst.msk [vmem:[%s5 + $0x10] sm:$0xff] %vm36, %v104
  %113 = vst.msk [vmem:[%s5 + $0x18] sm:$0xff] %vm36, %v105
  %114 = vst.msk [vmem:[%s5 + $0x20] sm:$0xff] %vm36, %v106
  %115 = vst.msk [vmem:[%s5 + $0x28] sm:$0xff] %vm36, %v107
  %116 = vst.msk [vmem:[%s5 + $0x30] sm:$0xff] %vm36, %v108
  %117 = vst.msk [vmem:[%s5 + $0x38] sm:$0xff] %vm36, %v109
  %v118 = vld [vmem:[%s3] sm:$0xff]
  %v119 = vld [vmem:[%s3 + $0x8] sm:$0xff]
  %v120 = vld [vmem:[%s4] sm:$0x1]
  %v122 = vperm.slane %v120, 0
  %124 = vmatpush.msra.mxu0 0.0
  %125 = vmatpush.msra.mxu0 0.0
  %126 = vmatpush.msra.mxu0 0.0
  %127 = vmatpush.msra.mxu0 0.0
  %128 = vmatpush.msra.mxu0 0.0
  %129 = vmatpush.msra.mxu0 0.0
  %130 = vmatpush.msra.mxu0 0.0
  %131 = vmatpush.msra.mxu0 0.0
  %132 = vmatpush.msra.mxu0 0.0
  %133 = vmatpush.msra.mxu0 0.0
  %134 = vmatpush.msra.mxu0 0.0
  %135 = vmatpush.msra.mxu0 0.0
  %136 = vmatpush.msra.mxu0 0.0
  %137 = vmatpush.msra.mxu0 0.0
  %138 = vmatpush.msra.mxu0 %v119
  %139 = vmatpush.msra.mxu0 %v118
  %140 = vmatmul.f32.gmra.mxu0 %v38
  %v141 = vpop.f32.mrf.mxu0
  %v142 = vadd.f32 %v122, %v141
  %143 = vmatmul.f32.gmra.mxu0 %v41
  %v144 = vpop.f32.mrf.mxu0
  %v145 = vadd.f32 %v122, %v144
  %146 = vmatmul.f32.gmra.mxu0 %v44
  %v147 = vpop.f32.mrf.mxu0
  %v148 = vadd.f32 %v122, %v147
  %149 = vmatmul.f32.gmra.mxu0 %v47
  %v150 = vpop.f32.mrf.mxu0
  %v151 = vadd.f32 %v122, %v150
  %152 = vmatmul.f32.gmra.mxu0 %v50
  %v153 = vpop.f32.mrf.mxu0
  %v154 = vadd.f32 %v122, %v153
  %155 = vmatmul.f32.gmra.mxu0 %v53
  %v156 = vpop.f32.mrf.mxu0
  %v157 = vadd.f32 %v122, %v156
  %158 = vmatmul.f32.gmra.mxu0 %v56
  %v159 = vpop.f32.mrf.mxu0
  %v160 = vadd.f32 %v122, %v159
  %161 = vmatmul.f32.gmra.mxu0 %v59
  %v162 = vpop.f32.mrf.mxu0
  %v163 = vadd.f32 %v122, %v162
  %164 = vdwg.mxu0
  %v165 = vmax.f32 %v142, 0.0
  %v166 = vmax.f32 %v145, 0.0
  %v167 = vmax.f32 %v148, 0.0
  %v168 = vmax.f32 %v151, 0.0
  %v169 = vmax.f32 %v154, 0.0
  %v170 = vmax.f32 %v157, 0.0
  %v171 = vmax.f32 %v160, 0.0
  %v172 = vmax.f32 %v163, 0.0
  %vm173 = vcmask 64512
  %174 = vst.msk [vmem:[%s6] sm:$0xff] %vm173, %v165
  %175 = vst.msk [vmem:[%s6 + $0x8] sm:$0xff] %vm173, %v166
  %176 = vst.msk [vmem:[%s6 + $0x10] sm:$0xff] %vm173, %v167
  %177 = vst.msk [vmem:[%s6 + $0x18] sm:$0xff] %vm173, %v168
  %178 = vst.msk [vmem:[%s6 + $0x20] sm:$0xff] %vm173, %v169
  %179 = vst.msk [vmem:[%s6 + $0x28] sm:$0xff] %vm173, %v170
  %180 = vst.msk [vmem:[%s6 + $0x30] sm:$0xff] %vm173, %v171
  %181 = vst.msk [vmem:[%s6 + $0x38] sm:$0xff] %vm173, %v172
  // Predicated region
  $region22: #{tpu_custom_call.1} parent=0 // pred_check
    _
  $region23: #{tpu_custom_call.1} parent=0 // pred_check_branch
    %183 = sbr.rel (0) target = $region25
  $region24: #{tpu_custom_call.1} parent=0 // pred_region
    _
  $region25: #{tpu_custom_call.1} parent=0 // pred_fallthru
    _
  // Predicated region
  $region26: #{tpu_custom_call.1} parent=0 // pred_check
    _
  $region27: #{tpu_custom_call.1} parent=0 // pred_check_branch
    %185 = sbr.rel (0) target = $region29
  $region28: #{tpu_custom_call.1} parent=0 // pred_region
    _
  $region29: #{tpu_custom_call.1} parent=0 // pred_fallthru
    _
  // Predicated region
  $region30: #{tpu_custom_call.1} parent=0 // pred_check
    _
  $region31: #{tpu_custom_call.1} parent=0 // pred_check_branch
    %187 = sbr.rel (0) target = $region33
  $region32: #{tpu_custom_call.1} parent=0 // pred_region
    _
  $region33: #{tpu_custom_call.1} parent=0 // pred_fallthru
    _
  // Predicated region
  $region34: #{tpu_custom_call.1} parent=0 // pred_check
    _
  $region35: #{tpu_custom_call.1} parent=0 // pred_check_branch
    %189 = sbr.rel (0) target = $region37
  $region36: #{tpu_custom_call.1} parent=0 // pred_region
    _
  $region37: #{tpu_custom_call.1} parent=0 // pred_fallthru
    _

</llo_original>
